<compile_context>
chip_gen: v7x
topology: tpu7x:2x2x1
jax: 0.10.0
libtpu: 0.0.40
codegen_flags: <defaults>
</compile_context>

<pallas_src>
import functools

import jax
import jax.numpy as jnp
from jax.experimental import pallas as pl
from jax.experimental.pallas import tpu as pltpu


def _att_output_kernel(x_ref, resid_ref, w_ref, b_ref, gamma_ref, beta_ref,
                       o_ref, *, eps: float):
    # x_ref:     (TM, H)   block of hidden_states rows (native dtype)
    # resid_ref: (TM, H)   block of input_tensor rows (residual)
    # w_ref:     (H, H)    dense weight, already transposed to (in, out)
    # b_ref:     (1, H)    dense bias
    # gamma_ref: (1, H)    LayerNorm weight
    # beta_ref:  (1, H)    LayerNorm bias

    # Linear on the MXU: native-dtype operands, f32 accumulation.
    h = jnp.dot(x_ref[...], w_ref[...], preferred_element_type=jnp.float32)
    h = h + b_ref[...].astype(jnp.float32)

    # Dropout: eval-mode identity (PyTorch nn.Dropout is a no-op in eval()).
    # TODO(synk): training-mode stochastic dropout via pltpu.prng_random_bits
    # if train-time semantics are ever required.

    # Residual add (f32 epilogue).
    h = h + resid_ref[...].astype(jnp.float32)

    # LayerNorm over the last dim, eps=1e-12 (matches BertLayerNorm).
    mean = jnp.mean(h, axis=-1, keepdims=True)
    centered = h - mean
    var = jnp.mean(centered * centered, axis=-1, keepdims=True)
    normed = centered * jax.lax.rsqrt(var + eps)
    out = normed * gamma_ref[...].astype(jnp.float32) \
        + beta_ref[...].astype(jnp.float32)

    o_ref[...] = out.astype(o_ref.dtype)


def bert_att_output(hidden_states, input_tensor, w, b, gamma, beta,
                    *, eps=1e-12, block_rows=512,
                    vmem_limit_bytes=64 * 1024 * 1024):
    """hidden_states, input_tensor: (B, S, H). w: (H, H) in PyTorch layout
    (out, in); b, gamma, beta: (H,). Returns (B, S, H)."""
    B, S, H = hidden_states.shape
    M = B * S
    out_dtype = hidden_states.dtype

    itemsize = jnp.dtype(hidden_states.dtype).itemsize
    # Sublane granularity of the second-to-last dim (packed dtypes pack 2x).
    sub = 16 if itemsize == 2 else 8

    # Row-tile size: as large as requested, clamped to (a) what the input
    # needs and (b) a VMEM budget accounting for the resident weight plus
    # double-buffered x / residual / output blocks; sublane-aligned.
    w_bytes = H * H * itemsize + 3 * H * 4            # weight + b/gamma/beta
    budget = max(vmem_limit_bytes - w_bytes, 1 << 20)
    # 2 (double buffer) * 3 arrays (x, resid, out) * tm * H * itemsize
    # + f32 epilogue temporaries (~2 * tm * H * 4).
    per_row = 2 * 3 * H * itemsize + 2 * H * 4
    tm_budget = max(budget // per_row, sub)

    m_aligned = -(-M // sub) * sub
    tm = min(block_rows, m_aligned, tm_budget)
    tm = max(sub, (tm // sub) * sub)

    # Pad rows to a tile multiple (ragged last block support).
    M_pad = -(-M // tm) * tm

    x2 = hidden_states.reshape(M, H)
    r2 = input_tensor.reshape(M, H)
    if M_pad != M:
        x2 = jnp.pad(x2, ((0, M_pad - M), (0, 0)))
        r2 = jnp.pad(r2, ((0, M_pad - M), (0, 0)))

    wt = w.T                     # (in, out) -> plain row-major matmul in-kernel
    b2 = b.reshape(1, H)
    g2 = gamma.reshape(1, H)
    be2 = beta.reshape(1, H)

    grid = (M_pad // tm,)

    # NOTE: weight/bias/gamma/beta have constant index_maps, so they are DMA'd
    # once and kept VMEM-resident across grid steps (no per-step re-fetch).
    out = pl.pallas_call(
        functools.partial(_att_output_kernel, eps=eps),
        out_shape=jax.ShapeDtypeStruct((M_pad, H), out_dtype),
        grid_spec=pltpu.PrefetchScalarGridSpec(
            num_scalar_prefetch=0,
            grid=grid,
            in_specs=[
                pl.BlockSpec((tm, H), lambda i: (i, 0)),  # x rows
                pl.BlockSpec((tm, H), lambda i: (i, 0)),  # residual rows
                pl.BlockSpec((H, H), lambda i: (0, 0)),   # W^T (resident)
                pl.BlockSpec((1, H), lambda i: (0, 0)),   # bias
                pl.BlockSpec((1, H), lambda i: (0, 0)),   # gamma
                pl.BlockSpec((1, H), lambda i: (0, 0)),   # beta
            ],
            out_specs=pl.BlockSpec((tm, H), lambda i: (i, 0)),
        ),
        compiler_params=pltpu.CompilerParams(
            dimension_semantics=("parallel",),
            vmem_limit_bytes=vmem_limit_bytes),
    )(x2, r2, wt, b2, g2, be2)

    if M_pad != M:
        out = out[:M]
    return out.reshape(B, S, H)


def _reference(hidden_states, input_tensor, w, b, gamma, beta, eps=1e-12):
    h = jnp.einsum("bsh,oh->bso", hidden_states.astype(jnp.float32),
                   w.astype(jnp.float32)) + b.astype(jnp.float32)
    h = h + input_tensor.astype(jnp.float32)
    mean = jnp.mean(h, axis=-1, keepdims=True)
    var = jnp.mean((h - mean) ** 2, axis=-1, keepdims=True)
    out = (h - mean) * jax.lax.rsqrt(var + eps) * gamma.astype(jnp.float32) \
        + beta.astype(jnp.float32)
    return out.astype(hidden_states.dtype)


if __name__ == "__main__":
    key = jax.random.PRNGKey(0)
    k1, k2, k3, k4, k5, k6 = jax.random.split(key, 6)

    # Small shapes consistent with the module: batch=2, seq=8, hidden=32.
    B, S, H = 2, 8, 32
    hidden_states = jax.random.normal(k1, (B, S, H), dtype=jnp.float32)
    input_tensor = jax.random.normal(k2, (B, S, H), dtype=jnp.float32)

    # nn.Linear(H, H): weight (H, H) = (out, in), bias (H,)
    w = jax.random.normal(k3, (H, H), dtype=jnp.float32) * 0.02
    b = jax.random.normal(k4, (H,), dtype=jnp.float32) * 0.02
    # LayerNorm(H): weight (H,), bias (H,)
    gamma = 1.0 + 0.1 * jax.random.normal(k5, (H,), dtype=jnp.float32)
    beta = 0.1 * jax.random.normal(k6, (H,), dtype=jnp.float32)

    out = bert_att_output(hidden_states, input_tensor, w, b, gamma, beta)
    out = jax.block_until_ready(out)
    ref = _reference(hidden_states, input_tensor, w, b, gamma, beta)
    assert out.shape == (B, S, H)
    assert jnp.allclose(out, ref, atol=1e-4, rtol=1e-4)

    # Exercise the ragged/multi-block path (M not divisible by the tile).
    B2, S2 = 2, 5
    hs2 = jax.random.normal(k1, (B2, S2, H), dtype=jnp.float32)
    it2 = jax.random.normal(k2, (B2, S2, H), dtype=jnp.float32)
    out2 = bert_att_output(hs2, it2, w, b, gamma, beta, block_rows=8)
    out2 = jax.block_until_ready(out2)
    ref2 = _reference(hs2, it2, w, b, gamma, beta)
    assert out2.shape == (B2, S2, H)
    assert jnp.allclose(out2, ref2, atol=1e-4, rtol=1e-4)

    # bf16 fast path (native-dtype MXU operands, f32 epilogue).
    hs3 = hidden_states.astype(jnp.bfloat16)
    it3 = input_tensor.astype(jnp.bfloat16)
    out3 = bert_att_output(hs3, it3, w.astype(jnp.bfloat16),
                           b.astype(jnp.bfloat16), gamma.astype(jnp.bfloat16),
                           beta.astype(jnp.bfloat16))
    out3 = jax.block_until_ready(out3)
    ref3 = _reference(hs3, it3, w.astype(jnp.bfloat16),
                      b.astype(jnp.bfloat16), gamma.astype(jnp.bfloat16),
                      beta.astype(jnp.bfloat16))
    assert out3.shape == (B, S, H)
    assert jnp.allclose(out3.astype(jnp.float32), ref3.astype(jnp.float32),
                        atol=5e-2, rtol=5e-2)

    print("KERNEL_OK")
</pallas_src>

<mosaic_0001>
module attributes {stable_mosaic.version = 11 : i64} {
  func.func @_att_output_kernel(%arg0: i32, %arg1: memref<16x32xf32, #tpu.memory_space<vmem>>, %arg2: memref<16x32xf32, #tpu.memory_space<vmem>>, %arg3: memref<32x32xf32, #tpu.memory_space<vmem>>, %arg4: memref<1x32xf32, #tpu.memory_space<vmem>>, %arg5: memref<1x32xf32, #tpu.memory_space<vmem>>, %arg6: memref<1x32xf32, #tpu.memory_space<vmem>>, %arg7: memref<16x32xf32, #tpu.memory_space<vmem>>) attributes {dimension_semantics = [#tpu.dimension_semantics<parallel>], iteration_bounds = array<i64: 1>, scalar_prefetch = 0 : i64, scratch_operands = 0 : i64, tpu.core_type = #tpu.core_type<tc>, window_params = [{transform_indices = @transform_0, window_bounds = array<i64: 16, 32>}, {transform_indices = @transform_1, window_bounds = array<i64: 16, 32>}, {pipeline_mode = #tpu.pipeline_mode<synchronous>, transform_indices = @transform_2, window_bounds = array<i64: 32, 32>}, {pipeline_mode = #tpu.pipeline_mode<synchronous>, transform_indices = @transform_3, window_bounds = array<i64: 1, 32>}, {pipeline_mode = #tpu.pipeline_mode<synchronous>, transform_indices = @transform_4, window_bounds = array<i64: 1, 32>}, {pipeline_mode = #tpu.pipeline_mode<synchronous>, transform_indices = @transform_5, window_bounds = array<i64: 1, 32>}, {transform_indices = @transform_6, window_bounds = array<i64: 16, 32>}]} {
    %c0 = arith.constant 0 : index
    %c0_0 = arith.constant 0 : index
    %0 = vector.load %arg1[%c0, %c0_0] : memref<16x32xf32, #tpu.memory_space<vmem>>, vector<16x32xf32>
    %c0_1 = arith.constant 0 : index
    %c0_2 = arith.constant 0 : index
    %1 = vector.load %arg3[%c0_1, %c0_2] : memref<32x32xf32, #tpu.memory_space<vmem>>, vector<32x32xf32>
    %cst = arith.constant dense<0.000000e+00> : vector<16x32xf32>
    %2 = tpu.matmul %0, %1, %cst {dimension_numbers = #tpu.dot_dimension_numbers<[1], [0], [0], [1], [0, 0, 1, 1], [], []>} : vector<16x32xf32>, vector<32x32xf32>, vector<16x32xf32> -> vector<16x32xf32>
    %c0_3 = arith.constant 0 : index
    %c0_4 = arith.constant 0 : index
    %3 = vector.load %arg4[%c0_3, %c0_4] : memref<1x32xf32, #tpu.memory_space<vmem>>, vector<1x32xf32>
    %4 = vector.broadcast %3 : vector<1x32xf32> to vector<16x32xf32>
    %5 = arith.addf %2, %4 : vector<16x32xf32>
    %c0_5 = arith.constant 0 : index
    %c0_6 = arith.constant 0 : index
    %6 = vector.load %arg2[%c0_5, %c0_6] : memref<16x32xf32, #tpu.memory_space<vmem>>, vector<16x32xf32>
    %7 = arith.addf %5, %6 : vector<16x32xf32>
    %cst_7 = arith.constant dense<0.000000e+00> : vector<16xf32>
    %8 = vector.multi_reduction <add>, %7, %cst_7 [1] : vector<16x32xf32> to vector<16xf32>
    %9 = vector.shape_cast %8 : vector<16xf32> to vector<16x1xf32>
    %cst_8 = arith.constant 3.200000e+01 : f32
    %10 = vector.broadcast %cst_8 : f32 to vector<16x1xf32>
    %11 = arith.divf %9, %10 : vector<16x1xf32>
    %12 = vector.broadcast %11 : vector<16x1xf32> to vector<16x32xf32>
    %13 = arith.subf %7, %12 : vector<16x32xf32>
    %14 = arith.mulf %13, %13 : vector<16x32xf32>
    %cst_9 = arith.constant dense<0.000000e+00> : vector<16xf32>
    %15 = vector.multi_reduction <add>, %14, %cst_9 [1] : vector<16x32xf32> to vector<16xf32>
    %16 = vector.shape_cast %15 : vector<16xf32> to vector<16x1xf32>
    %cst_10 = arith.constant 3.200000e+01 : f32
    %17 = vector.broadcast %cst_10 : f32 to vector<16x1xf32>
    %18 = arith.divf %16, %17 : vector<16x1xf32>
    %cst_11 = arith.constant 9.99999996E-13 : f32
    %19 = vector.broadcast %cst_11 : f32 to vector<16x1xf32>
    %20 = arith.addf %18, %19 : vector<16x1xf32>
    %21 = math.rsqrt %20 : vector<16x1xf32>
    %22 = vector.broadcast %21 : vector<16x1xf32> to vector<16x32xf32>
    %23 = arith.mulf %13, %22 : vector<16x32xf32>
    %c0_12 = arith.constant 0 : index
    %c0_13 = arith.constant 0 : index
    %24 = vector.load %arg5[%c0_12, %c0_13] : memref<1x32xf32, #tpu.memory_space<vmem>>, vector<1x32xf32>
    %25 = vector.broadcast %24 : vector<1x32xf32> to vector<16x32xf32>
    %26 = arith.mulf %23, %25 : vector<16x32xf32>
    %c0_14 = arith.constant 0 : index
    %c0_15 = arith.constant 0 : index
    %27 = vector.load %arg6[%c0_14, %c0_15] : memref<1x32xf32, #tpu.memory_space<vmem>>, vector<1x32xf32>
    %28 = vector.broadcast %27 : vector<1x32xf32> to vector<16x32xf32>
    %29 = arith.addf %26, %28 : vector<16x32xf32>
    %c0_16 = arith.constant 0 : index
    %c0_17 = arith.constant 0 : index
    %30 = vector.load %arg7[%c0_16, %c0_17] : memref<16x32xf32, #tpu.memory_space<vmem>>, vector<16x32xf32>
    tpu.vector_store %arg7[%c0_16, %c0_17], %29 {strides = array<i32>} : memref<16x32xf32, #tpu.memory_space<vmem>>, vector<16x32xf32>,
    return
  }
  func.func @transform_0(%arg0: i32) -> (i32, i32) {
    %c0_i32 = arith.constant 0 : i32
    %c0_i32_0 = arith.constant 0 : i32
    return %arg0, %c0_i32 : i32, i32
  }
  func.func @transform_1(%arg0: i32) -> (i32, i32) {
    %c0_i32 = arith.constant 0 : i32
    %c0_i32_0 = arith.constant 0 : i32
    return %arg0, %c0_i32 : i32, i32
  }
  func.func @transform_2(%arg0: i32) -> (i32, i32) {
    %c0_i32 = arith.constant 0 : i32
    %c0_i32_0 = arith.constant 0 : i32
    %c0_i32_1 = arith.constant 0 : i32
    return %c0_i32, %c0_i32_0 : i32, i32
  }
  func.func @transform_3(%arg0: i32) -> (i32, i32) {
    %c0_i32 = arith.constant 0 : i32
    %c0_i32_0 = arith.constant 0 : i32
    %c0_i32_1 = arith.constant 0 : i32
    return %c0_i32, %c0_i32_0 : i32, i32
  }
  func.func @transform_4(%arg0: i32) -> (i32, i32) {
    %c0_i32 = arith.constant 0 : i32
    %c0_i32_0 = arith.constant 0 : i32
    %c0_i32_1 = arith.constant 0 : i32
    return %c0_i32, %c0_i32_0 : i32, i32
  }
  func.func @transform_5(%arg0: i32) -> (i32, i32) {
    %c0_i32 = arith.constant 0 : i32
    %c0_i32_0 = arith.constant 0 : i32
    %c0_i32_1 = arith.constant 0 : i32
    return %c0_i32, %c0_i32_0 : i32, i32
  }
  func.func @transform_6(%arg0: i32) -> (i32, i32) {
    %c0_i32 = arith.constant 0 : i32
    %c0_i32_0 = arith.constant 0 : i32
    return %arg0, %c0_i32 : i32, i32
  }
}

</mosaic_0001>

<llo_original>
// kernel: tpu_custom_call.1
$region0: #{tpu_custom_call.1}
  #allocation0 [shape = 'u32[]', space=smem, size = 0x4, offset = 0x4, fixed_abs, tag = 'smem constant byte address 0x4 - core index']
  #allocation1 [shape = 'u32[144,128]{1,0:T(1,128)}', space=vmem, size = 0x12000, scoped, tag = 'internal scratch']
  %s0 = inlined_call_operand.hbm [shape: f32[16,32], index: 0, kind: input, shape index: {}]
  %s1 = inlined_call_operand.hbm [shape: f32[16,32], index: 1, kind: input, shape index: {}]
  %s2 = inlined_call_operand.hbm [shape: f32[32,32], index: 2, kind: input, shape index: {}]
  %s3 = inlined_call_operand.hbm [shape: f32[1,32], index: 3, kind: input, shape index: {}]
  %s4 = inlined_call_operand.hbm [shape: f32[1,32], index: 4, kind: input, shape index: {}]
  %s5 = inlined_call_operand.hbm [shape: f32[1,32], index: 5, kind: input, shape index: {}]
  %s6 = inlined_call_operand.hbm [shape: f32[16,32], index: 6, kind: output, shape index: {}]
  %s7 = sld [smem:[#allocation0]]
  $region58: #{tpu_custom_call.1} parent=0
    _
  %s9 = ssub.s32 1, %s7
  %s10 = scalar_select 0, %s9, %s7
  $region1: #{tpu_custom_call.1} parent=0
    #allocation2 [shape = 'u8[8192]{0}', space=vmem, size = 0x2000, scoped, tag = 'input window, operand 0, single buffered']
    #allocation3 [shape = 's32[1]{0}', space=sflag, size = 0x4, scoped, tag = 'scoped memory for tpu_custom_call.1']
    #allocation4 [shape = 's32[1]{0}', space=sflag, size = 0x4, scoped, tag = 'scoped memory for tpu_custom_call.1']
    #allocation5 [shape = 'u8[8192]{0}', space=vmem, size = 0x2000, scoped, tag = 'input window, operand 1, single buffered']
    #allocation6 [shape = 's32[1]{0}', space=sflag, size = 0x4, scoped, tag = 'scoped memory for tpu_custom_call.1']
    #allocation7 [shape = 'u8[16384]{0}', space=vmem, size = 0x4000, scoped, tag = 'input window, operand 2, single buffered']
    #allocation8 [shape = 'u8[512]{0}', space=vmem, size = 0x400, scoped, tag = 'input window, operand 3, single buffered']
    #allocation9 [shape = 's32[1]{0}', space=sflag, size = 0x4, scoped, tag = 'scoped memory for tpu_custom_call.1']
    #allocation10 [shape = 'u8[512]{0}', space=vmem, size = 0x400, scoped, tag = 'input window, operand 4, single buffered']
    #allocation11 [shape = 'u8[512]{0}', space=vmem, size = 0x400, scoped, tag = 'input window, operand 5, single buffered']
    #allocation12 [shape = 's32[1]{0}', space=sflag, size = 0x4, scoped, tag = 'scoped memory for tpu_custom_call.1']
    #allocation13 [shape = 'u8[8192]{0}', space=vmem, size = 0x2000, scoped, tag = 'output window, operand 0, single buffered']
    %11 = vsyncpa [#allocation3], 0
    %12 = vsyncpa [#allocation6], 0
    %13 = vsyncpa [#allocation9], 0
    %14 = vsyncpa [#allocation12], 0
    %15 = vsyncpa [#allocation4], 0
    // Predicated region
    $region2: #{tpu_custom_call.1} parent=1 // pred_check
      _
    $region3: #{tpu_custom_call.1} parent=1 // pred_check_branch
      %17 = sbr.rel (0) target = $region5
    $region4: #{tpu_custom_call.1} parent=1 // pred_region
      %s19 = ssub.s32 256, 256
      %20 = vsyncadd [#allocation3], %s19
      %s21 = sshll.u32 [#allocation2], 4
      %s22 = int_to_ptr.vmem [resolvable:$true] %s21
      %27 = dma.hbm_to_vmem [thread:$0]  %s0, 256, %s22, [#allocation3], 128, 128, 8
    $region5: #{tpu_custom_call.1} parent=1 // pred_fallthru
      _
    // Predicated region
    $region6: #{tpu_custom_call.1} parent=1 // pred_check
      _
    $region7: #{tpu_custom_call.1} parent=1 // pred_check_branch
      %29 = sbr.rel (0) target = $region9
    $region8: #{tpu_custom_call.1} parent=1 // pred_region
      %s31 = ssub.s32 256, 256
      %32 = vsyncadd [#allocation6], %s31
      %s33 = sshll.u32 [#allocation5], 4
      %s34 = int_to_ptr.vmem [resolvable:$true] %s33
      %39 = dma.hbm_to_vmem [thread:$0]  %s1, 256, %s34, [#allocation6], 128, 128, 8
    $region9: #{tpu_custom_call.1} parent=1 // pred_fallthru
      _
    // Predicated region
    $region10: #{tpu_custom_call.1} parent=1 // pred_check
      _
    $region11: #{tpu_custom_call.1} parent=1 // pred_check_branch
      %41 = sbr.rel (0) target = $region13
    $region12: #{tpu_custom_call.1} parent=1 // pred_region
      %s43 = ssub.s32 512, 512
      %44 = vsyncadd [#allocation6], %s43
      %s45 = sshll.u32 [#allocation7], 4
      %s46 = int_to_ptr.vmem [resolvable:$true] %s45
      %51 = dma.hbm_to_vmem [thread:$0]  %s2, 512, %s46, [#allocation6], 128, 128, 8
    $region13: #{tpu_custom_call.1} parent=1 // pred_fallthru
      _
    // Predicated region
    $region14: #{tpu_custom_call.1} parent=1 // pred_check
      _
    $region15: #{tpu_custom_call.1} parent=1 // pred_check_branch
      %53 = sbr.rel (0) target = $region17
    $region16: #{tpu_custom_call.1} parent=1 // pred_region
      %s55 = ssub.s32 16, 16
      %56 = vsyncadd [#allocation9], %s55
      %s58 = sshll.u32 [#allocation8], 4
      %s59 = int_to_ptr.vmem [resolvable:$true] %s58
      %61 = dma.hbm_to_vmem [thread:$0]  %s3, 16, %s59, [#allocation9]
    $region17: #{tpu_custom_call.1} parent=1 // pred_fallthru
      _
    // Predicated region
    $region18: #{tpu_custom_call.1} parent=1 // pred_check
      _
    $region19: #{tpu_custom_call.1} parent=1 // pred_check_branch
      %63 = sbr.rel (0) target = $region21
    $region20: #{tpu_custom_call.1} parent=1 // pred_region
      %s65 = ssub.s32 16, 16
      %66 = vsyncadd [#allocation9], %s65
      %s68 = sshll.u32 [#allocation10], 4
      %s69 = int_to_ptr.vmem [resolvable:$true] %s68
      %71 = dma.hbm_to_vmem [thread:$0]  %s4, 16, %s69, [#allocation9]
    $region21: #{tpu_custom_call.1} parent=1 // pred_fallthru
      _
    // Predicated region
    $region22: #{tpu_custom_call.1} parent=1 // pred_check
      _
    $region23: #{tpu_custom_call.1} parent=1 // pred_check_branch
      %73 = sbr.rel (0) target = $region25
    $region24: #{tpu_custom_call.1} parent=1 // pred_region
      %s75 = ssub.s32 16, 16
      %76 = vsyncadd [#allocation12], %s75
      %s78 = sshll.u32 [#allocation11], 4
      %s79 = int_to_ptr.vmem [resolvable:$true] %s78
      %81 = dma.hbm_to_vmem [thread:$0]  %s5, 16, %s79, [#allocation12]
    $region25: #{tpu_custom_call.1} parent=1 // pred_fallthru
      _
    // Predicated region
    $region26: #{tpu_custom_call.1} parent=1 // pred_check
      _
    $region27: #{tpu_custom_call.1} parent=1 // pred_check_branch
      %83 = sbr.rel (0) target = $region29
    $region28: #{tpu_custom_call.1} parent=1 // pred_region
      %84 = dma.done [#allocation3], 256
    $region29: #{tpu_custom_call.1} parent=1 // pred_fallthru
      _
    // Predicated region
    $region30: #{tpu_custom_call.1} parent=1 // pred_check
      _
    $region31: #{tpu_custom_call.1} parent=1 // pred_check_branch
      %86 = sbr.rel (0) target = $region33
    $region32: #{tpu_custom_call.1} parent=1 // pred_region
      %87 = dma.done [#allocation6], 256
    $region33: #{tpu_custom_call.1} parent=1 // pred_fallthru
      _
    // Predicated region
    $region34: #{tpu_custom_call.1} parent=1 // pred_check
      _
    $region35: #{tpu_custom_call.1} parent=1 // pred_check_branch
      %89 = sbr.rel (0) target = $region37
    $region36: #{tpu_custom_call.1} parent=1 // pred_region
      %90 = dma.done [#allocation6], 512
    $region37: #{tpu_custom_call.1} parent=1 // pred_fallthru
      _
    // Predicated region
    $region38: #{tpu_custom_call.1} parent=1 // pred_check
      _
    $region39: #{tpu_custom_call.1} parent=1 // pred_check_branch
      %92 = sbr.rel (0) target = $region41
    $region40: #{tpu_custom_call.1} parent=1 // pred_region
      %93 = dma.done [#allocation9], 16
    $region41: #{tpu_custom_call.1} parent=1 // pred_fallthru
      _
    // Predicated region
    $region42: #{tpu_custom_call.1} parent=1 // pred_check
      _
    $region43: #{tpu_custom_call.1} parent=1 // pred_check_branch
      %95 = sbr.rel (0) target = $region45
    $region44: #{tpu_custom_call.1} parent=1 // pred_region
      %96 = dma.done [#allocation9], 16
    $region45: #{tpu_custom_call.1} parent=1 // pred_fallthru
      _
    // Predicated region
    $region46: #{tpu_custom_call.1} parent=1 // pred_check
      _
    $region47: #{tpu_custom_call.1} parent=1 // pred_check_branch
      %98 = sbr.rel (0) target = $region49
    $region48: #{tpu_custom_call.1} parent=1 // pred_region
      %99 = dma.done [#allocation12], 16
    $region49: #{tpu_custom_call.1} parent=1 // pred_fallthru
      _
    %v100 = vld [vmem:[#allocation2] sm:$0xff]
    %v101 = vld [vmem:[#allocation2 + $0x8] sm:$0xff]
    %v102 = vld [vmem:[#allocation7] sm:$0xff]
    %v103 = vld [vmem:[#allocation7 + $0x8] sm:$0xff]
    %v104 = vld [vmem:[#allocation7 + $0x10] sm:$0xff]
    %v105 = vld [vmem:[#allocation7 + $0x18] sm:$0xff]
    %v106 = vld [vmem:[#allocation8] sm:$0x1]
    %v108 = vlaneseq
    %v109 = vshrl.u32 %v108, 7
    %v110 = vsub.s32 0, %v109
    %v111 = vrot.slane %v106, %v110
    %vm113 = vcmask 261120
    %v115 = vsel %vm113, %v100, 0
    %v118 = vsel %vm113, %v101, 0
    %120 = vmatprep.subr.mxu0 0.0
    %121 = vmatpush1.msra.mxu0 %v102
    %122 = vmatprep.subr.mxu0 0.0
    %123 = vmatpush1.msra.mxu0 %v103
    %124 = vmatprep.subr.mxu0 0.0
    %125 = vmatpush1.msra.mxu0 %v104
    %126 = vmatprep.subr.mxu0 0.0
    %127 = vmatpush1.msra.mxu0 %v105
    %128 = vmatprep.subr.mxu0 0.0
    %129 = vmatpush1.msra.mxu0 0.0
    %130 = vmatprep.subr.mxu0 0.0
    %131 = vmatpush1.msra.mxu0 0.0
    %132 = vmatprep.subr.mxu0 0.0
    %133 = vmatpush1.msra.mxu0 0.0
    %134 = vmatprep.subr.mxu0 0.0
    %135 = vmatpush1.msra.mxu0 0.0
    %136 = vmatprep.subr.mxu0 0.0
    %137 = vmatpush1.msra.mxu0 0.0
    %138 = vmatprep.subr.mxu0 0.0
    %139 = vmatpush1.msra.mxu0 0.0
    %140 = vmatprep.subr.mxu0 0.0
    %141 = vmatpush1.msra.mxu0 0.0
    %142 = vmatprep.subr.mxu0 0.0
    %143 = vmatpush1.msra.mxu0 0.0
    %144 = vmatprep.subr.mxu0 0.0
    %145 = vmatpush1.msra.mxu0 0.0
    %146 = vmatprep.subr.mxu0 0.0
    %147 = vmatpush1.msra.mxu0 0.0
    %148 = vmatprep.subr.mxu0 0.0
    %149 = vmatpush1.msra.mxu0 0.0
    %150 = vmatprep.subr.mxu0 0.0
    %151 = vmatpush1.msra.mxu0 0.0
    %152 = vmatprep.subr.mxu0 0.0
    %153 = vmatpush1.msra.mxu0 0.0
    %154 = vmatprep.subr.mxu0 0.0
    %155 = vmatpush1.msra.mxu0 0.0
    %156 = vmatprep.subr.mxu0 0.0
    %157 = vmatpush1.msra.mxu0 0.0
    %158 = vmatprep.subr.mxu0 0.0
    %159 = vmatpush1.msra.mxu0 0.0
    %160 = vmatprep.subr.mxu0 0.0
    %161 = vmatpush1.msra.mxu0 0.0
    %162 = vmatprep.subr.mxu0 0.0
    %163 = vmatpush1.msra.mxu0 0.0
    %164 = vmatprep.subr.mxu0 0.0
    %165 = vmatpush1.msra.mxu0 0.0
    %166 = vmatprep.subr.mxu0 0.0
    %167 = vmatpush1.msra.mxu0 0.0
    %168 = vmatprep.subr.mxu0 0.0
    %169 = vmatpush1.msra.mxu0 0.0
    %170 = vmatprep.subr.mxu0 0.0
    %171 = vmatpush1.msra.mxu0 0.0
    %172 = vmatprep.subr.mxu0 0.0
    %173 = vmatpush1.msra.mxu0 0.0
    %174 = vmatprep.subr.mxu0 0.0
    %175 = vmatpush1.msra.mxu0 0.0
    %176 = vmatprep.subr.mxu0 0.0
    %177 = vmatpush1.msra.mxu0 0.0
    %178 = vmatprep.subr.mxu0 0.0
    %179 = vmatpush1.msra.mxu0 0.0
    %180 = vmatprep.subr.mxu0 0.0
    %181 = vmatpush1.msra.mxu0 0.0
    %182 = vmatprep.subr.mxu0 0.0
    %183 = vmatpush1.msra.mxu0 0.0
    %184 = vmatprep.mubr.f32.mxu0 0.0
    %185 = vmatmul.mubr.f32.gmra.mrb[0].mxu0 %v115
    %v186 = vpop.f32.mrb[0].mxu0
    %v187 = vadd.f32 %v111, %v186
    %v188 = vpop.f32.mrb[0].mxu0
    %189 = vmatprep.mubr.f32.mxu0 0.0
    %190 = vmatmul.mubr.f32.gmra.mrb[0].mxu0 %v118
    %v191 = vpop.f32.mrb[0].mxu0
    %v192 = vadd.f32 %v111, %v191
    %v193 = vpop.f32.mrb[0].mxu0
    %194 = vdwg.mxu0
    %v195 = vld [vmem:[#allocation5] sm:$0xff]
    %v196 = vld [vmem:[#allocation5 + $0x8] sm:$0xff]
    %v197 = vadd.f32 %v187, %v195
    %v198 = vadd.f32 %v192, %v196
    %v199 = vsel %vm113, %v197, 0.0
    %200 = vadd.xlane.f32.xlu0 %v199
    %v201 = vpop.xlane.xlu0 %200
    %v202 = vsel %vm113, %v198, 0.0
    %203 = vadd.xlane.f32.xlu0 %v202
    %v204 = vpop.xlane.xlu0 %203
    %v205 = vrcp.pop 32.0
    %v206 = vmul.f32 %v201, %v205
    %v207 = vmul.f32 %v204, %v205
    %v208 = vsub.f32 %v197, %v206
    %v209 = vsub.f32 %v198, %v207
    %v210 = vmul.f32 %v208, %v208
    %v211 = vmul.f32 %v209, %v209
    %v212 = vsel %vm113, %v210, 0.0
    %213 = vadd.xlane.f32.xlu0 %v212
    %v214 = vpop.xlane.xlu0 %213
    %v215 = vsel %vm113, %v211, 0.0
    %216 = vadd.xlane.f32.xlu0 %v215
    %v217 = vpop.xlane.xlu0 %216
    %v218 = vmul.f32 %v214, %v205
    %v219 = vmul.f32 %v217, %v205
    %v220 = vadd.f32 %v218, 1e-12
    %v221 = vadd.f32 %v219, 1e-12
    %v222 = vrsqrt.pop %v220
    %v223 = vrsqrt.pop %v221
    %v224 = vmul.f32 %v208, %v222
    %v225 = vmul.f32 %v209, %v223
    %v226 = vld [vmem:[#allocation10] sm:$0x1]
    %v228 = vlaneseq
    %v229 = vshrl.u32 %v228, 7
    %v230 = vsub.s32 0, %v229
    %v231 = vrot.slane %v226, %v230
    %v233 = vmul.f32 %v224, %v231
    %v234 = vmul.f32 %v225, %v231
    %v235 = vld [vmem:[#allocation11] sm:$0x1]
    %v237 = vlaneseq
    %v238 = vshrl.u32 %v237, 7
    %v239 = vsub.s32 0, %v238
    %v240 = vrot.slane %v235, %v239
    %v242 = vadd.f32 %v233, %v240
    %v243 = vadd.f32 %v234, %v240
    %244 = vst.msk [vmem:[#allocation13] sm:$0xff] %vm113, %v242
    %245 = vst.msk [vmem:[#allocation13 + $0x8] sm:$0xff] %vm113, %v243
    // Predicated region
    $region50: #{tpu_custom_call.1} parent=1 // pred_check
      _
    $region51: #{tpu_custom_call.1} parent=1 // pred_check_branch
      %247 = sbr.rel (0) target = $region53
    $region52: #{tpu_custom_call.1} parent=1 // pred_region
      %s249 = ssub.s32 256, 256
      %250 = vsyncadd [#allocation4], %s249
      %s251 = sshll.u32 [#allocation13], 4
      %s252 = int_to_ptr.vmem [resolvable:$true] %s251
      %257 = dma.vmem_to_hbm [thread:$0]  %s252, 256, %s6, [#allocation4], 128, 128, 8
    $region53: #{tpu_custom_call.1} parent=1 // pred_fallthru
      _
    // Predicated region
    $region54: #{tpu_custom_call.1} parent=1 // pred_check
      _
    $region55: #{tpu_custom_call.1} parent=1 // pred_check_branch
      %259 = sbr.rel (0) target = $region57
    $region56: #{tpu_custom_call.1} parent=1 // pred_region
      %260 = dma.done [#allocation4], 256
    $region57: #{tpu_custom_call.1} parent=1 // pred_fallthru
      _
    %261 = vsyncpa [#allocation3], 1
    %262 = vsyncpa [#allocation6], 1
    %263 = vsyncpa [#allocation9], 1
    %264 = vsyncpa [#allocation12], 1
    %265 = vsyncpa [#allocation4], 1

</llo_original>
